<compile_context>
chip_gen: v6e
topology: v6e:2x2x1
jax: 0.10.0
libtpu: 0.0.40
codegen_flags: <defaults>
</compile_context>

<pallas_src>
import functools

import jax
import jax.numpy as jnp
from jax.experimental import pallas as pl
from jax.experimental.pallas import tpu as pltpu

_VMEM_LIMIT_BYTES = 32 * 1024 * 1024


# ---------------------------------------------------------------------------
# Pass 1: global average pool over spatial positions (tiled over HW).
# ---------------------------------------------------------------------------
def _pool_kernel(x_ref, mean_ref, *, inv_hw):
    # x_ref:    (C, T)  one HW tile of one batch element (input dtype)
    # mean_ref: (C, 1)  f32, resident across the HW-tile grid axis (accumulator)
    t = pl.program_id(1)

    @pl.when(t == 0)
    def _():
        mean_ref[...] = jnp.zeros_like(mean_ref)

    mean_ref[...] += jnp.sum(x_ref[...].astype(jnp.float32), axis=-1,
                             keepdims=True)

    @pl.when(t == pl.num_programs(1) - 1)
    def _():
        mean_ref[...] = mean_ref[...] * inv_hw


# ---------------------------------------------------------------------------
# Pass 2: per-channel gate broadcast-multiplied over spatial positions.
# ---------------------------------------------------------------------------
def _scale_kernel(x_ref, gate_ref, o_ref):
    # x_ref:    (C, T)  input dtype
    # gate_ref: (C, 1)  input dtype (sigmoid gate, cast host-side)
    # o_ref:    (C, T)
    o_ref[...] = (x_ref[...] * gate_ref[...]).astype(o_ref.dtype)


def _choose_hw_tile(hw, channels, itemsize, target_bytes=4 << 20):
    """Largest lane-dense (multiple-of-128) divisor of hw under ~target_bytes."""
    cap = (target_bytes // max(1, channels * itemsize)) // 128 * 128
    cap = max(cap, 128)
    if hw <= cap:
        return hw
    d = cap
    while d >= 128:
        if hw % d == 0:
            return d
        d -= 128
    # No 128-aligned divisor (hw not a multiple of 128): fall back to one block.
    return hw


def _channel_gate(y, conv_w, k_size):
    """sigmoid(conv1d(y, conv_w, padding=(k-1)//2, bias=False)) over channels.

    y: (B, C) f32 pooled means; conv_w: (k_size,) f32.
    k-tap shift-and-add with zero-padded edges (mirrors PyTorch Conv1d).
    """
    pad = (k_size - 1) // 2
    c = y.shape[-1]
    idx = jnp.arange(c)
    out = jnp.zeros_like(y)
    for i in range(k_size):
        off = i - pad
        shifted = jnp.roll(y, -off, axis=-1)
        valid = (idx + off >= 0) & (idx + off < c)
        out = out + conv_w[i] * jnp.where(valid[None, :], shifted, 0.0)
    return jax.nn.sigmoid(out)


@functools.partial(jax.jit, static_argnums=(2,))
def eca_forward(x, conv_w, k_size=3):
    """ECA forward. x: (B, C, H, W), conv_w: (k_size,) float32."""
    B, C, H, W = x.shape
    HW = H * W
    itemsize = jnp.dtype(x.dtype).itemsize
    T = _choose_hw_tile(HW, C, itemsize)
    n_tiles = HW // T

    x2 = x.reshape(B, C, HW)

    # ---- Pass 1: tiled global average pool -> (B, C, 1) f32 means. ---------
    pooled = pl.pallas_call(
        functools.partial(_pool_kernel, inv_hw=1.0 / HW),
        out_shape=jax.ShapeDtypeStruct((B, C, 1), jnp.float32),
        grid=(B, n_tiles),
        in_specs=[
            pl.BlockSpec((pl.Squeezed(), C, T), lambda b, t: (b, 0, t)),
        ],
        out_specs=pl.BlockSpec((pl.Squeezed(), C, 1), lambda b, t: (b, 0, 0)),
        compiler_params=pltpu.CompilerParams(
            dimension_semantics=("parallel", "arbitrary"),
            vmem_limit_bytes=_VMEM_LIMIT_BYTES),
        cost_estimate=pl.CostEstimate(
            flops=B * C * HW, transcendentals=0,
            bytes_accessed=B * C * HW * itemsize + B * C * 4),
    )(x2)

    # ---- Tiny channel conv + sigmoid on (B, C): plain JAX between passes. --
    gate = _channel_gate(pooled[:, :, 0], conv_w, k_size)      # (B, C) f32
    gate = gate.astype(x.dtype)[:, :, None]                    # (B, C, 1) x-dtype

    # ---- Pass 2: tiled broadcast multiply. ----------------------------------
    out = pl.pallas_call(
        _scale_kernel,
        out_shape=jax.ShapeDtypeStruct((B, C, HW), x.dtype),
        grid=(B, n_tiles),
        in_specs=[
            pl.BlockSpec((pl.Squeezed(), C, T), lambda b, t: (b, 0, t)),
            pl.BlockSpec((pl.Squeezed(), C, 1), lambda b, t: (b, 0, 0)),
        ],
        out_specs=pl.BlockSpec((pl.Squeezed(), C, T), lambda b, t: (b, 0, t)),
        compiler_params=pltpu.CompilerParams(
            dimension_semantics=("parallel", "parallel"),
            vmem_limit_bytes=_VMEM_LIMIT_BYTES),
        cost_estimate=pl.CostEstimate(
            flops=B * C * HW, transcendentals=0,
            bytes_accessed=2 * B * C * HW * itemsize + B * C * itemsize),
    )(x2, gate)

    return out.reshape(B, C, H, W)
    # TODO(synk): add a fully fused single-pass path (read x once, write once)
    # for feature maps that fit VMEM; requires the k-tap channel conv to run
    # in-kernel along the sublane axis.


# ---------------------------------------------------------------------------
# Pure-JAX reference (independent band-matrix formulation of the conv1d).
# ---------------------------------------------------------------------------
def make_band_matrix(conv_w, channels, k_size):
    pad = (k_size - 1) // 2
    c_idx = jnp.arange(channels)[:, None]
    j_idx = jnp.arange(channels)[None, :]
    off = j_idx - c_idx + pad
    valid = (off >= 0) & (off < k_size)
    return jnp.where(valid, conv_w[jnp.clip(off, 0, k_size - 1)], 0.0)


def eca_reference(x, conv_w, k_size=3):
    y = jnp.mean(x.astype(jnp.float32), axis=(2, 3))            # (B, C)
    band = make_band_matrix(conv_w, x.shape[1], k_size)         # (C, C)
    y = jnp.einsum("cj,bj->bc", band, y)
    y = jax.nn.sigmoid(y)
    return (x.astype(jnp.float32) * y[:, :, None, None]).astype(x.dtype)


if __name__ == "__main__":
    key = jax.random.PRNGKey(0)
    kx, kw = jax.random.split(key)

    B, C, H, W = 2, 4, 16, 16
    k_size = 3

    x = jax.random.normal(kx, (B, C, H, W), dtype=jnp.float32)
    # Deterministic conv1d weight init (PyTorch default: U(-1/sqrt(fan_in), +)).
    bound = 1.0 / jnp.sqrt(jnp.float32(k_size))
    conv_w = jax.random.uniform(kw, (k_size,), minval=-bound, maxval=bound,
                                dtype=jnp.float32)

    out = eca_forward(x, conv_w, k_size)
    out = jax.block_until_ready(out)

    ref = eca_reference(x, conv_w, k_size)
    assert out.shape == (B, C, H, W)
    assert jnp.allclose(out, ref, atol=1e-5, rtol=1e-5), "mismatch vs reference"

    print("KERNEL_OK")
</pallas_src>

<mosaic_0001>
module attributes {stable_mosaic.version = 11 : i64} {
  func.func @_pool_kernel(%arg0: i32, %arg1: i32, %arg2: memref<1x4x256xf32, #tpu.memory_space<vmem>>, %arg3: memref<1x4x1xf32, #tpu.memory_space<vmem>>) attributes {dimension_semantics = [#tpu.dimension_semantics<parallel>, #tpu.dimension_semantics<arbitrary>], iteration_bounds = array<i64: 2, 1>, scalar_prefetch = 0 : i64, scratch_operands = 0 : i64, tpu.core_type = #tpu.core_type<tc>, window_params = [{transform_indices = @transform_0, window_bounds = array<i64: 1, 4, 256>}, {transform_indices = @transform_1, window_bounds = array<i64: 1, 4, 1>}]} {
    %c0_i32 = arith.constant 0 : i32
    %0 = arith.cmpi eq, %arg1, %c0_i32 : i32
    %1 = arith.extui %0 : i1 to i32
    %c0_i32_0 = arith.constant 0 : i32
    %2 = arith.cmpi ne, %1, %c0_i32_0 : i32
    scf.if %2 {
      %cst_11 = arith.constant 0.000000e+00 : f32
      %16 = vector.broadcast %cst_11 : f32 to vector<4x1xf32>
      %c0_12 = arith.constant 0 : index
      %c0_13 = arith.constant 0 : index
      %c0_14 = arith.constant 0 : index
      %17 = vector.load %arg3[%c0_12, %c0_13, %c0_14] : memref<1x4x1xf32, #tpu.memory_space<vmem>>, vector<1x4x1xf32>
      %18 = vector.shape_cast %17 : vector<1x4x1xf32> to vector<4x1xf32>
      %19 = vector.shape_cast %16 : vector<4x1xf32> to vector<1x4x1xf32>
      tpu.vector_store %arg3[%c0_12, %c0_13, %c0_14], %19 {strides = array<i32>} : memref<1x4x1xf32, #tpu.memory_space<vmem>>, vector<1x4x1xf32>,
    } else {
    }
    %c0 = arith.constant 0 : index
    %c0_1 = arith.constant 0 : index
    %c0_2 = arith.constant 0 : index
    %3 = vector.load %arg3[%c0, %c0_1, %c0_2] : memref<1x4x1xf32, #tpu.memory_space<vmem>>, vector<1x4x1xf32>
    %4 = vector.shape_cast %3 : vector<1x4x1xf32> to vector<4x1xf32>
    %c0_3 = arith.constant 0 : index
    %c0_4 = arith.constant 0 : index
    %c0_5 = arith.constant 0 : index
    %5 = vector.load %arg2[%c0_3, %c0_4, %c0_5] : memref<1x4x256xf32, #tpu.memory_space<vmem>>, vector<1x4x256xf32>
    %6 = vector.shape_cast %5 : vector<1x4x256xf32> to vector<4x256xf32>
    %cst = arith.constant dense<0.000000e+00> : vector<4xf32>
    %7 = vector.multi_reduction <add>, %6, %cst [1] : vector<4x256xf32> to vector<4xf32>
    %8 = vector.shape_cast %7 : vector<4xf32> to vector<4x1xf32>
    %9 = arith.addf %4, %8 : vector<4x1xf32>
    %c0_6 = arith.constant 0 : index
    %c0_7 = arith.constant 0 : index
    %c0_8 = arith.constant 0 : index
    %10 = vector.load %arg3[%c0_6, %c0_7, %c0_8] : memref<1x4x1xf32, #tpu.memory_space<vmem>>, vector<1x4x1xf32>
    %11 = vector.shape_cast %10 : vector<1x4x1xf32> to vector<4x1xf32>
    %12 = vector.shape_cast %9 : vector<4x1xf32> to vector<1x4x1xf32>
    tpu.vector_store %arg3[%c0_6, %c0_7, %c0_8], %12 {strides = array<i32>} : memref<1x4x1xf32, #tpu.memory_space<vmem>>, vector<1x4x1xf32>,
    %c0_i32_9 = arith.constant 0 : i32
    %13 = arith.cmpi eq, %arg1, %c0_i32_9 : i32
    %14 = arith.extui %13 : i1 to i32
    %c0_i32_10 = arith.constant 0 : i32
    %15 = arith.cmpi ne, %14, %c0_i32_10 : i32
    scf.if %15 {
      %c0_11 = arith.constant 0 : index
      %c0_12 = arith.constant 0 : index
      %c0_13 = arith.constant 0 : index
      %16 = vector.load %arg3[%c0_11, %c0_12, %c0_13] : memref<1x4x1xf32, #tpu.memory_space<vmem>>, vector<1x4x1xf32>
      %17 = vector.shape_cast %16 : vector<1x4x1xf32> to vector<4x1xf32>
      %cst_14 = arith.constant 3.906250e-03 : f32
      %18 = vector.broadcast %cst_14 : f32 to vector<4x1xf32>
      %19 = arith.mulf %17, %18 : vector<4x1xf32>
      %c0_15 = arith.constant 0 : index
      %c0_16 = arith.constant 0 : index
      %c0_17 = arith.constant 0 : index
      %20 = vector.load %arg3[%c0_15, %c0_16, %c0_17] : memref<1x4x1xf32, #tpu.memory_space<vmem>>, vector<1x4x1xf32>
      %21 = vector.shape_cast %20 : vector<1x4x1xf32> to vector<4x1xf32>
      %22 = vector.shape_cast %19 : vector<4x1xf32> to vector<1x4x1xf32>
      tpu.vector_store %arg3[%c0_15, %c0_16, %c0_17], %22 {strides = array<i32>} : memref<1x4x1xf32, #tpu.memory_space<vmem>>, vector<1x4x1xf32>,
    } else {
    }
    return
  }
  func.func @transform_0(%arg0: i32, %arg1: i32) -> (i32, i32, i32) {
    %c0_i32 = arith.constant 0 : i32
    %c0_i32_0 = arith.constant 0 : i32
    return %arg0, %c0_i32, %arg1 : i32, i32, i32
  }
  func.func @transform_1(%arg0: i32, %arg1: i32) -> (i32, i32, i32) {
    %c0_i32 = arith.constant 0 : i32
    %c0_i32_0 = arith.constant 0 : i32
    %c0_i32_1 = arith.constant 0 : i32
    return %arg0, %c0_i32, %c0_i32_0 : i32, i32, i32
  }
}

module attributes {stable_mosaic.version = 11 : i64} {
  func.func @_scale_kernel(%arg0: i32, %arg1: i32, %arg2: memref<1x4x256xf32, #tpu.memory_space<vmem>>, %arg3: memref<1x4x1xf32, #tpu.memory_space<vmem>>, %arg4: memref<1x4x256xf32, #tpu.memory_space<vmem>>) attributes {dimension_semantics = [#tpu.dimension_semantics<parallel>, #tpu.dimension_semantics<parallel>], iteration_bounds = array<i64: 2, 1>, scalar_prefetch = 0 : i64, scratch_operands = 0 : i64, tpu.core_type = #tpu.core_type<tc>, window_params = [{transform_indices = @transform_0, window_bounds = array<i64: 1, 4, 256>}, {transform_indices = @transform_1, window_bounds = array<i64: 1, 4, 1>}, {transform_indices = @transform_2, window_bounds = array<i64: 1, 4, 256>}]} {
    %c0 = arith.constant 0 : index
    %c0_0 = arith.constant 0 : index
    %c0_1 = arith.constant 0 : index
    %0 = vector.load %arg2[%c0, %c0_0, %c0_1] : memref<1x4x256xf32, #tpu.memory_space<vmem>>, vector<1x4x256xf32>
    %1 = vector.shape_cast %0 : vector<1x4x256xf32> to vector<4x256xf32>
    %c0_2 = arith.constant 0 : index
    %c0_3 = arith.constant 0 : index
    %c0_4 = arith.constant 0 : index
    %2 = vector.load %arg3[%c0_2, %c0_3, %c0_4] : memref<1x4x1xf32, #tpu.memory_space<vmem>>, vector<1x4x1xf32>
    %3 = vector.shape_cast %2 : vector<1x4x1xf32> to vector<4x1xf32>
    %4 = vector.broadcast %3 : vector<4x1xf32> to vector<4x256xf32>
    %5 = arith.mulf %1, %4 : vector<4x256xf32>
    %c0_5 = arith.constant 0 : index
    %c0_6 = arith.constant 0 : index
    %c0_7 = arith.constant 0 : index
    %6 = vector.load %arg4[%c0_5, %c0_6, %c0_7] : memref<1x4x256xf32, #tpu.memory_space<vmem>>, vector<1x4x256xf32>
    %7 = vector.shape_cast %6 : vector<1x4x256xf32> to vector<4x256xf32>
    %8 = vector.shape_cast %5 : vector<4x256xf32> to vector<1x4x256xf32>
    tpu.vector_store %arg4[%c0_5, %c0_6, %c0_7], %8 {strides = array<i32>} : memref<1x4x256xf32, #tpu.memory_space<vmem>>, vector<1x4x256xf32>,
    return
  }
  func.func @transform_0(%arg0: i32, %arg1: i32) -> (i32, i32, i32) {
    %c0_i32 = arith.constant 0 : i32
    %c0_i32_0 = arith.constant 0 : i32
    return %arg0, %c0_i32, %arg1 : i32, i32, i32
  }
  func.func @transform_1(%arg0: i32, %arg1: i32) -> (i32, i32, i32) {
    %c0_i32 = arith.constant 0 : i32
    %c0_i32_0 = arith.constant 0 : i32
    %c0_i32_1 = arith.constant 0 : i32
    return %arg0, %c0_i32, %c0_i32_0 : i32, i32, i32
  }
  func.func @transform_2(%arg0: i32, %arg1: i32) -> (i32, i32, i32) {
    %c0_i32 = arith.constant 0 : i32
    %c0_i32_0 = arith.constant 0 : i32
    return %arg0, %c0_i32, %arg1 : i32, i32, i32
  }
}

</mosaic_0001>

<llo_original>
// kernel: eca_forward.3
$region0: #{eca_forward.3}
  #allocation0 [shape = 'u32[]', space=smem, size = 0x4, offset = 0x4, fixed_abs, tag = 'smem constant byte address 0x4 - core index']
  #allocation1 [shape = 'u32[144,128]{1,0:T(1,128)}', space=vmem, size = 0x12000, scoped, tag = 'internal scratch']
  %s0 = inlined_call_operand.vmem [shape: f32[2,4,256], index: 0, kind: input, shape index: {}]
  %s1 = inlined_call_operand.vmem [shape: f32[2,4,1], index: 1, kind: input, shape index: {}]
  %s2 = inlined_call_operand.vmem [shape: f32[2,4,256], index: 2, kind: output, shape index: {}]
  %s3 = sld [smem:[#allocation0]]
  $region41: #{eca_forward.3} parent=0
    _
  %s5 = ssub.s32 1, %s3
  %s6 = scalar_select 0, %s5, %s3
  loop: start=0, step=1, limit=4
  $region2: #{eca_forward.3} parent=0 // loop_pre_header
    _
  $region3: #{eca_forward.3} parent=0 // loop_header
    %s8 = sphi 0, %s12
    %p9 = scmp.ge.s32.totalorder %s8, 4
    %s15 = sphi 0, %s27
    %s16 = sphi 0, %s23
    %s17 = sphi 0, %s15
    %s18 = sphi 0, %s16
    %s19 = sphi 0, %s17
    %s20 = sphi 0, %s18
    %s32 = sphi 0, %s34
    %s35 = sphi 0, %s32
    %s36 = sphi 0, %s35
    %s52 = sphi 0, %s36
    %s58 = sphi 0, %s60
    %s61 = sphi 0, %s58
    %s62 = sphi 0, %s61
    %s78 = sphi 0, %s62
    %s86 = sphi 0, %s88
    %s89 = sphi 0, %s86
    %s90 = sphi 0, %s89
    %s106 = sphi 0, %s90
  $region4: #{eca_forward.3} parent=0 // loop_header_branch
    %11 = sbr.rel (%p9) target = $region8
  $region5: #{eca_forward.3} parent=0 // loop_body
    %s13 = ssub.s32 %s8, 1
    %s14 = ssub.s32 %s8, 2
    %s21 = sadd.s32 1, %s16
    %p22 = scmp.ge.s32.totalorder %s21, 1
    %s23 = scalar_select %p22, 0, %s21
    %s24 = sadd.s32 1, %s15
    %s25 = scalar_select %p22, %s24, %s15
    %p26 = scmp.ge.s32.totalorder %s25, 2
    %s27 = scalar_select %p26, 0, %s25
    %s28 = ssub.s32 %s15, %s27
    %s29 = ssub.s32 %s16, %s23
    %s30 = sor.u32 %s28, %s29
    %p31 = scmp.eq.s32.totalorder %s30, 0
    %s33 = sadd.s32 %s32, 1
    %s34 = scalar_select %p31, %s32, %s33
    %p37 = pneg %p31
    %p38 = scmp.eq.s32.totalorder %s8, 1
    %p39 = por %p37, %p38
    %p40 = scmp.ne.s32.totalorder %s32, %s35
    %p41 = scmp.eq.s32.totalorder %s8, 0
    %p42 = por %p40, %p41
    %p43 = scmp.ne.s32.totalorder %s32, %s35
    %p44 = scmp.eq.s32.totalorder %s13, 1
    %p45 = por %p43, %p44
    %p46 = scmp.ne.s32.totalorder %s35, %s36
    %p47 = scmp.eq.s32.totalorder %s13, 0
    %p48 = por %p46, %p47
    %p49 = scmp.ne.s32.totalorder %s35, %s36
    %p50 = scmp.eq.s32.totalorder %s14, 1
    %p51 = por %p49, %p50
    %p53 = scmp.ne.s32.totalorder %s36, %s52
    %p54 = scmp.eq.s32.totalorder %s14, 0
    %p55 = por %p53, %p54
    %s56 = ssub.s32 %s15, %s27
    %p57 = scmp.eq.s32.totalorder %s56, 0
    %s59 = sadd.s32 %s58, 1
    %s60 = scalar_select %p57, %s58, %s59
    %p63 = pneg %p57
    %p64 = scmp.eq.s32.totalorder %s8, 1
    %p65 = por %p63, %p64
    %p66 = scmp.ne.s32.totalorder %s58, %s61
    %p67 = scmp.eq.s32.totalorder %s8, 0
    %p68 = por %p66, %p67
    %p69 = scmp.ne.s32.totalorder %s58, %s61
    %p70 = scmp.eq.s32.totalorder %s13, 1
    %p71 = por %p69, %p70
    %p72 = scmp.ne.s32.totalorder %s61, %s62
    %p73 = scmp.eq.s32.totalorder %s13, 0
    %p74 = por %p72, %p73
    %p75 = scmp.ne.s32.totalorder %s61, %s62
    %p76 = scmp.eq.s32.totalorder %s14, 1
    %p77 = por %p75, %p76
    %p79 = scmp.ne.s32.totalorder %s62, %s78
    %p80 = scmp.eq.s32.totalorder %s14, 0
    %p81 = por %p79, %p80
    %s82 = ssub.s32 %s15, %s27
    %s83 = ssub.s32 %s16, %s23
    %s84 = sor.u32 %s82, %s83
    %p85 = scmp.eq.s32.totalorder %s84, 0
    %s87 = sadd.s32 %s86, 1
    %s88 = scalar_select %p85, %s86, %s87
    %p91 = pneg %p85
    %p92 = scmp.eq.s32.totalorder %s8, 1
    %p93 = por %p91, %p92
    %p94 = scmp.ne.s32.totalorder %s86, %s89
    %p95 = scmp.eq.s32.totalorder %s8, 0
    %p96 = por %p94, %p95
    %p97 = scmp.ne.s32.totalorder %s86, %s89
    %p98 = scmp.eq.s32.totalorder %s13, 1
    %p99 = por %p97, %p98
    %p100 = scmp.ne.s32.totalorder %s89, %s90
    %p101 = scmp.eq.s32.totalorder %s13, 0
    %p102 = por %p100, %p101
    %p103 = scmp.ne.s32.totalorder %s89, %s90
    %p104 = scmp.eq.s32.totalorder %s14, 1
    %p105 = por %p103, %p104
    %p107 = scmp.ne.s32.totalorder %s90, %s106
    %p108 = scmp.eq.s32.totalorder %s14, 0
    %p109 = por %p107, %p108
    %p110 = scmp.le.s32.totalorder 1, %s8
    %p111 = scmp.lt.s32.totalorder %s8, 3
    %p112 = pnand %p110, %p111
    %p113 = pneg %p112
    // Predicated region
    $region9: #{eca_forward.3} parent=5 // pred_check
      _
    $region10: #{eca_forward.3} parent=5 // pred_check_branch
      %115 = sbr.rel (%p112) target = $region12
    $region11: #{eca_forward.3} parent=5 // pred_region
      %s116 = ssub.s32 %s8, 1
    $region12: #{eca_forward.3} parent=5 // pred_fallthru
      _
    %p117 = scmp.lt.s32.totalorder %s8, 2
    // Predicated region
    $region13: #{eca_forward.3} parent=5 // pred_check
      %p118 = pneg %p117
    $region14: #{eca_forward.3} parent=5 // pred_check_branch
      %120 = sbr.rel (%p118) target = $region16
    $region15: #{eca_forward.3} parent=5 // pred_region
      // Predicated region
      $region17: #{eca_forward.3} parent=15 // pred_check
        %p121 = pneg %p42
      $region18: #{eca_forward.3} parent=15 // pred_check_branch
        %123 = sbr.rel (%p121) target = $region20
      $region19: #{eca_forward.3} parent=15 // pred_region
        %s124 = smul.u32 2, %s16
        %p125 = scmp.lt.s32.totalorder %s15, 1
        %s126 = scalar_select %p125, %s15, 1
        %p127 = scmp.lt.s32.totalorder %s124, 1
        %s128 = scalar_select %p127, %s124, 1
        %s129 = smul.addr %s126, 2
        %s130 = sadd.s32 %s128, %s129
        %s131 = smul.addr %s130, 4
        %s132 = scalar_lea.vmem %s0, %s131
        %s133 = smul.u32 2, %s16
      $region20: #{eca_forward.3} parent=15 // pred_fallthru
        _
      // Predicated region
      $region21: #{eca_forward.3} parent=15 // pred_check
        %p134 = pneg %p68
      $region22: #{eca_forward.3} parent=15 // pred_check_branch
        %136 = sbr.rel (%p134) target = $region24
      $region23: #{eca_forward.3} parent=15 // pred_region
        %p137 = scmp.lt.s32.totalorder %s15, 1
        %s138 = scalar_select %p137, %s15, 1
        %s139 = smul.addr %s138, 4
        %s140 = scalar_lea.vmem %s1, %s139
      $region24: #{eca_forward.3} parent=15 // pred_fallthru
        _
    $region16: #{eca_forward.3} parent=5 // pred_fallthru
      _
    %p141 = scmp.le.s32.totalorder 1, %s8
    %p142 = scmp.lt.s32.totalorder %s8, 3
    %p143 = pnand %p141, %p142
    %p144 = pneg %p143
    // Predicated region
    $region25: #{eca_forward.3} parent=5 // pred_check
      _
    $region26: #{eca_forward.3} parent=5 // pred_check_branch
      %146 = sbr.rel (%p143) target = $region28
    $region27: #{eca_forward.3} parent=5 // pred_region
      %s147 = ssub.s32 %s8, 1
      %s148 = smul.u32 2, %s18
      %p149 = scmp.lt.s32.totalorder %s17, 1
      %s150 = scalar_select %p149, %s17, 1
      %p151 = scmp.lt.s32.totalorder %s148, 1
      %s152 = scalar_select %p151, %s148, 1
      %s153 = smul.addr %s150, 2
      %s154 = sadd.s32 %s152, %s153
      %s155 = smul.addr %s154, 4
      %s156 = scalar_lea.vmem %s0, %s155
      %p157 = pneg %p48
      %p158 = pneg %p45
      %p159 = scmp.lt.s32.totalorder %s17, 1
      %s160 = scalar_select %p159, %s17, 1
      %s161 = smul.addr %s160, 4
      %s162 = scalar_lea.vmem %s1, %s161
      %p163 = pneg %p74
      %p164 = pneg %p71
      %p165 = pneg %p102
      %p166 = pneg %p99
      %s167 = smul.u32 2, %s18
      %p168 = scmp.lt.s32.totalorder %s17, 1
      %s169 = scalar_select %p168, %s17, 1
      %p170 = scmp.lt.s32.totalorder %s167, 1
      %s171 = scalar_select %p170, %s167, 1
      %s172 = smul.addr %s169, 2
      %s173 = sadd.s32 %s171, %s172
      %s174 = smul.addr %s173, 4
      %s175 = scalar_lea.vmem %s2, %s174
      %s176 = smul.u32 2, %s18
      %p177 = scmp.lt.s32.totalorder %s17, 1
      %s178 = scalar_select %p177, %s17, 1
      %p179 = scmp.lt.s32.totalorder %s176, 1
      %s180 = scalar_select %p179, %s176, 1
      %s181 = smul.addr %s178, 2
      %s182 = sadd.s32 %s180, %s181
      %s183 = smul.addr %s182, 4
      %s184 = scalar_lea.vmem %s0, %s183
      %s185 = smul.u32 2, %s18
      %p186 = scmp.lt.s32.totalorder %s17, 1
      %s187 = scalar_select %p186, %s17, 1
      %s188 = smul.addr %s187, 4
      %s189 = scalar_lea.vmem %s1, %s188
      %s190 = smul.u32 2, %s18
      %p191 = scmp.lt.s32.totalorder %s17, 1
      %s192 = scalar_select %p191, %s17, 1
      %p193 = scmp.lt.s32.totalorder %s190, 1
      %s194 = scalar_select %p193, %s190, 1
      %s195 = smul.addr %s192, 2
      %s196 = sadd.s32 %s194, %s195
      %s197 = smul.addr %s196, 4
      %s198 = scalar_lea.vmem %s2, %s197
      %s199 = smul.u32 2, %s18
      %v200 = vld [vmem:[%s184] sm:$0xff]
      %v201 = vld [vmem:[%s189] sm:$0xf]
      %203 = vset.pattern.permute.xlu0 0
      %204 = vperm.xlu0 %203, %v201
      %v205 = vpop.permute.xlu0 %204
      %v207 = vunpack.c.l.s4 839922192
      %v208 = vunpack.c.0.s8 %v207
      %v209 = vlaneseq
      %v210 = vshrl.u32 %v209, 7
      %v211 = vsub.s32 %v208, %v210
      %v212 = vrot.slane %v205, %v211
      %v214 = vmul.f32 %v200, %v212
      %215 = vst [vmem:[%s198] sm:$0xff] %v214
      %s216 = smul.u32 2, %s18
      %p217 = scmp.lt.s32.totalorder %s17, 1
      %s218 = scalar_select %p217, %s17, 1
      %p219 = scmp.lt.s32.totalorder %s216, 1
      %s220 = scalar_select %p219, %s216, 1
      %s221 = smul.addr %s218, 2
      %s222 = sadd.s32 %s220, %s221
      %s223 = smul.addr %s222, 4
      %s224 = scalar_lea.vmem %s2, %s223
      // Predicated region
      $region29: #{eca_forward.3} parent=27 // pred_check
        %p225 = pneg %p99
      $region30: #{eca_forward.3} parent=27 // pred_check_branch
        %227 = sbr.rel (%p225) target = $region32
      $region31: #{eca_forward.3} parent=27 // pred_region
        %s228 = smul.u32 2, %s18
      $region32: #{eca_forward.3} parent=27 // pred_fallthru
        _
    $region28: #{eca_forward.3} parent=5 // pred_fallthru
      _
    %p229 = scmp.le.s32.totalorder 2, %s8
    // Predicated region
    $region33: #{eca_forward.3} parent=5 // pred_check
      %p230 = pneg %p229
    $region34: #{eca_forward.3} parent=5 // pred_check_branch
      %232 = sbr.rel (%p230) target = $region36
    $region35: #{eca_forward.3} parent=5 // pred_region
      %s233 = ssub.s32 %s8, 2
      // Predicated region
      $region37: #{eca_forward.3} parent=35 // pred_check
        %p234 = pneg %p105
      $region38: #{eca_forward.3} parent=35 // pred_check_branch
        %236 = sbr.rel (%p234) target = $region40
      $region39: #{eca_forward.3} parent=35 // pred_region
        %s237 = smul.u32 2, %s20
        %p238 = scmp.lt.s32.totalorder %s19, 1
        %s239 = scalar_select %p238, %s19, 1
        %p240 = scmp.lt.s32.totalorder %s237, 1
        %s241 = scalar_select %p240, %s237, 1
        %s242 = smul.addr %s239, 2
        %s243 = sadd.s32 %s241, %s242
        %s244 = smul.addr %s243, 4
        %s245 = scalar_lea.vmem %s2, %s244
      $region40: #{eca_forward.3} parent=35 // pred_fallthru
        _
    $region36: #{eca_forward.3} parent=5 // pred_fallthru
      _
  $region6: #{eca_forward.3} parent=0 // loop_footer
    %s12 = sadd.s32 1, %s8
  $region7: #{eca_forward.3} parent=0 // loop_footer_branch
    %7 = sbr.rel target = $region3
  $region8: #{eca_forward.3} parent=0 // loop_exit
    _

// kernel: eca_forward.2
$region0: #{eca_forward.2}
  #allocation0 [shape = 'u32[]', space=smem, size = 0x4, offset = 0x4, fixed_abs, tag = 'smem constant byte address 0x4 - core index']
  #allocation1 [shape = 'u32[144,128]{1,0:T(1,128)}', space=vmem, size = 0x12000, scoped, tag = 'internal scratch']
  %s0 = inlined_call_operand.vmem [shape: f32[2,4,256], index: 0, kind: input, shape index: {}]
  %s1 = inlined_call_operand.vmem [shape: f32[2,4,1], index: 1, kind: output, shape index: {}]
  %s2 = sld [smem:[#allocation0]]
  $region45: #{eca_forward.2} parent=0
    _
  %s4 = ssub.s32 1, %s2
  %s5 = scalar_select 0, %s4, %s2
  loop: start=0, step=1, limit=4
  $region2: #{eca_forward.2} parent=0 // loop_pre_header
    _
  $region3: #{eca_forward.2} parent=0 // loop_header
    %s7 = sphi 0, %s11
    %p8 = scmp.ge.s32.totalorder %s7, 4
    %s14 = sphi 0, %s26
    %s15 = sphi 0, %s22
    %s16 = sphi 0, %s14
    %s17 = sphi 0, %s15
    %s18 = sphi 0, %s16
    %s19 = sphi 0, %s17
    %s31 = sphi 0, %s33
    %s34 = sphi 0, %s31
    %s35 = sphi 0, %s34
    %s51 = sphi 0, %s35
    %s57 = sphi 0, %s59
    %s60 = sphi 0, %s57
    %s61 = sphi 0, %s60
    %s77 = sphi 0, %s61
  $region4: #{eca_forward.2} parent=0 // loop_header_branch
    %10 = sbr.rel (%p8) target = $region8
  $region5: #{eca_forward.2} parent=0 // loop_body
    %s12 = ssub.s32 %s7, 1
    %s13 = ssub.s32 %s7, 2
    %s20 = sadd.s32 1, %s15
    %p21 = scmp.ge.s32.totalorder %s20, 1
    %s22 = scalar_select %p21, 0, %s20
    %s23 = sadd.s32 1, %s14
    %s24 = scalar_select %p21, %s23, %s14
    %p25 = scmp.ge.s32.totalorder %s24, 2
    %s26 = scalar_select %p25, 0, %s24
    %s27 = ssub.s32 %s14, %s26
    %s28 = ssub.s32 %s15, %s22
    %s29 = sor.u32 %s27, %s28
    %p30 = scmp.eq.s32.totalorder %s29, 0
    %s32 = sadd.s32 %s31, 1
    %s33 = scalar_select %p30, %s31, %s32
    %p36 = pneg %p30
    %p37 = scmp.eq.s32.totalorder %s7, 1
    %p38 = por %p36, %p37
    %p39 = scmp.ne.s32.totalorder %s31, %s34
    %p40 = scmp.eq.s32.totalorder %s7, 0
    %p41 = por %p39, %p40
    %p42 = scmp.ne.s32.totalorder %s31, %s34
    %p43 = scmp.eq.s32.totalorder %s12, 1
    %p44 = por %p42, %p43
    %p45 = scmp.ne.s32.totalorder %s34, %s35
    %p46 = scmp.eq.s32.totalorder %s12, 0
    %p47 = por %p45, %p46
    %p48 = scmp.ne.s32.totalorder %s34, %s35
    %p49 = scmp.eq.s32.totalorder %s13, 1
    %p50 = por %p48, %p49
    %p52 = scmp.ne.s32.totalorder %s35, %s51
    %p53 = scmp.eq.s32.totalorder %s13, 0
    %p54 = por %p52, %p53
    %s55 = ssub.s32 %s14, %s26
    %p56 = scmp.eq.s32.totalorder %s55, 0
    %s58 = sadd.s32 %s57, 1
    %s59 = scalar_select %p56, %s57, %s58
    %p62 = pneg %p56
    %p63 = scmp.eq.s32.totalorder %s7, 1
    %p64 = por %p62, %p63
    %p65 = scmp.ne.s32.totalorder %s57, %s60
    %p66 = scmp.eq.s32.totalorder %s7, 0
    %p67 = por %p65, %p66
    %p68 = scmp.ne.s32.totalorder %s57, %s60
    %p69 = scmp.eq.s32.totalorder %s12, 1
    %p70 = por %p68, %p69
    %p71 = scmp.ne.s32.totalorder %s60, %s61
    %p72 = scmp.eq.s32.totalorder %s12, 0
    %p73 = por %p71, %p72
    %p74 = scmp.ne.s32.totalorder %s60, %s61
    %p75 = scmp.eq.s32.totalorder %s13, 1
    %p76 = por %p74, %p75
    %p78 = scmp.ne.s32.totalorder %s61, %s77
    %p79 = scmp.eq.s32.totalorder %s13, 0
    %p80 = por %p78, %p79
    %p81 = scmp.le.s32.totalorder 1, %s7
    %p82 = scmp.lt.s32.totalorder %s7, 3
    %p83 = pnand %p81, %p82
    %p84 = pneg %p83
    // Predicated region
    $region9: #{eca_forward.2} parent=5 // pred_check
      _
    $region10: #{eca_forward.2} parent=5 // pred_check_branch
      %86 = sbr.rel (%p83) target = $region12
    $region11: #{eca_forward.2} parent=5 // pred_region
      %s87 = ssub.s32 %s7, 1
    $region12: #{eca_forward.2} parent=5 // pred_fallthru
      _
    %p88 = scmp.lt.s32.totalorder %s7, 2
    // Predicated region
    $region13: #{eca_forward.2} parent=5 // pred_check
      %p89 = pneg %p88
    $region14: #{eca_forward.2} parent=5 // pred_check_branch
      %91 = sbr.rel (%p89) target = $region16
    $region15: #{eca_forward.2} parent=5 // pred_region
      // Predicated region
      $region17: #{eca_forward.2} parent=15 // pred_check
        %p92 = pneg %p41
      $region18: #{eca_forward.2} parent=15 // pred_check_branch
        %94 = sbr.rel (%p92) target = $region20
      $region19: #{eca_forward.2} parent=15 // pred_region
        %s95 = smul.u32 2, %s15
        %p96 = scmp.lt.s32.totalorder %s14, 1
        %s97 = scalar_select %p96, %s14, 1
        %p98 = scmp.lt.s32.totalorder %s95, 1
        %s99 = scalar_select %p98, %s95, 1
        %s100 = smul.addr %s97, 2
        %s101 = sadd.s32 %s99, %s100
        %s102 = smul.addr %s101, 4
        %s103 = scalar_lea.vmem %s0, %s102
        %s104 = smul.u32 2, %s15
      $region20: #{eca_forward.2} parent=15 // pred_fallthru
        _
    $region16: #{eca_forward.2} parent=5 // pred_fallthru
      _
    %p105 = scmp.le.s32.totalorder 1, %s7
    %p106 = scmp.lt.s32.totalorder %s7, 3
    %p107 = pnand %p105, %p106
    %p108 = pneg %p107
    // Predicated region
    $region21: #{eca_forward.2} parent=5 // pred_check
      _
    $region22: #{eca_forward.2} parent=5 // pred_check_branch
      %110 = sbr.rel (%p107) target = $region24
    $region23: #{eca_forward.2} parent=5 // pred_region
      %s111 = ssub.s32 %s7, 1
      %s112 = smul.u32 2, %s17
      %p113 = scmp.lt.s32.totalorder %s16, 1
      %s114 = scalar_select %p113, %s16, 1
      %p115 = scmp.lt.s32.totalorder %s112, 1
      %s116 = scalar_select %p115, %s112, 1
      %s117 = smul.addr %s114, 2
      %s118 = sadd.s32 %s116, %s117
      %s119 = smul.addr %s118, 4
      %s120 = scalar_lea.vmem %s0, %s119
      %p121 = pneg %p47
      %p122 = pneg %p44
      %p123 = pneg %p73
      %p124 = pneg %p70
      %p125 = scmp.lt.s32.totalorder %s16, 1
      %s126 = scalar_select %p125, %s16, 1
      %s127 = smul.addr %s126, 4
      %s128 = scalar_lea.vmem %s1, %s127
      %s129 = smul.u32 2, %s17
      %p130 = scmp.lt.s32.totalorder %s16, 1
      %s131 = scalar_select %p130, %s16, 1
      %p132 = scmp.lt.s32.totalorder %s129, 1
      %s133 = scalar_select %p132, %s129, 1
      %s134 = smul.addr %s131, 2
      %s135 = sadd.s32 %s133, %s134
      %s136 = smul.addr %s135, 4
      %s137 = scalar_lea.vmem %s0, %s136
      %s138 = smul.u32 2, %s17
      %p139 = scmp.lt.s32.totalorder %s16, 1
      %s140 = scalar_select %p139, %s16, 1
      %s141 = smul.addr %s140, 4
      %s142 = scalar_lea.vmem %s1, %s141
      %p143 = scmp.eq.s32.totalorder %s17, 0
      // Predicated region
      $region25: #{eca_forward.2} parent=23 // pred_check
        %p144 = pneg %p143
      $region26: #{eca_forward.2} parent=23 // pred_check_branch
        %146 = sbr.rel (%p144) target = $region28
      $region27: #{eca_forward.2} parent=23 // pred_region
        %vm147 = vcmask 3072
        %148 = vst.msk [vmem:[%s142] sm:$0xf] %vm147, 0.0
      $region28: #{eca_forward.2} parent=23 // pred_fallthru
        _
      %v149 = vld [vmem:[%s142] sm:$0xf]
      %v150 = vld [vmem:[%s137] sm:$0xff]
      %v152 = vcombine.high %v150, %v150
      %vm154 = vcmask 1043456
      %v155 = vsel %vm154, %v150, 0.0
      %v156 = vsel %vm154, %v152, 0.0
      %v157 = vadd.f32 %v155, %v156
      %158 = vadd.xlane.f32.xlu0 %v157
      %v159 = vpop.xlane.xlu0 %158
      %v160 = vadd.f32 %v149, %v159
      %vm161 = vcmask 3072
      %162 = vst.msk [vmem:[%s142] sm:$0xf] %vm161, %v160
      // Predicated region
      $region29: #{eca_forward.2} parent=23 // pred_check
        %p163 = pneg %p143
      $region30: #{eca_forward.2} parent=23 // pred_check_branch
        %165 = sbr.rel (%p163) target = $region32
      $region31: #{eca_forward.2} parent=23 // pred_region
        %v166 = vld [vmem:[%s142] sm:$0xf]
        %v167 = vmul.f32 %v166, 0.00390625
        %168 = vst.msk [vmem:[%s142] sm:$0xf] %vm161, %v167
      $region32: #{eca_forward.2} parent=23 // pred_fallthru
        _
      %p169 = scmp.lt.s32.totalorder %s16, 1
      %s170 = scalar_select %p169, %s16, 1
      %s171 = smul.addr %s170, 4
      %s172 = scalar_lea.vmem %s1, %s171
      // Predicated region
      $region33: #{eca_forward.2} parent=23 // pred_check
        %p173 = pneg %p70
      $region34: #{eca_forward.2} parent=23 // pred_check_branch
        %175 = sbr.rel (%p173) target = $region36
      $region35: #{eca_forward.2} parent=23 // pred_region
        _
      $region36: #{eca_forward.2} parent=23 // pred_fallthru
        _
    $region24: #{eca_forward.2} parent=5 // pred_fallthru
      _
    %p176 = scmp.le.s32.totalorder 2, %s7
    // Predicated region
    $region37: #{eca_forward.2} parent=5 // pred_check
      %p177 = pneg %p176
    $region38: #{eca_forward.2} parent=5 // pred_check_branch
      %179 = sbr.rel (%p177) target = $region40
    $region39: #{eca_forward.2} parent=5 // pred_region
      %s180 = ssub.s32 %s7, 2
      // Predicated region
      $region41: #{eca_forward.2} parent=39 // pred_check
        %p181 = pneg %p76
      $region42: #{eca_forward.2} parent=39 // pred_check_branch
        %183 = sbr.rel (%p181) target = $region44
      $region43: #{eca_forward.2} parent=39 // pred_region
        %p184 = scmp.lt.s32.totalorder %s18, 1
        %s185 = scalar_select %p184, %s18, 1
        %s186 = smul.addr %s185, 4
        %s187 = scalar_lea.vmem %s1, %s186
      $region44: #{eca_forward.2} parent=39 // pred_fallthru
        _
    $region40: #{eca_forward.2} parent=5 // pred_fallthru
      _
  $region6: #{eca_forward.2} parent=0 // loop_footer
    %s11 = sadd.s32 1, %s7
  $region7: #{eca_forward.2} parent=0 // loop_footer_branch
    %6 = sbr.rel target = $region3
  $region8: #{eca_forward.2} parent=0 // loop_exit
    _

</llo_original>
